<compile_context>
chip_gen: v6e
topology: v6e:2x2x1
jax: 0.10.0
libtpu: 0.0.40
codegen_flags: <defaults>
</compile_context>

<pallas_src>
from functools import partial

import numpy as np
import jax
import jax.numpy as jnp
from jax.experimental import pallas as pl
from jax.experimental.pallas import tpu as pltpu  # noqa: F401  (TPU backend)


# ----------------------------------------------------------------------------
# Fused kernel: per-class support mean + backbone matmul (x2, shared weights)
# + Gram-identity Euclidean cdist.
#   labels_ref : (1, n_s) int32   support labels in {0..n_way-1}
#   xs_ref     : (n_s, F)         flattened support images
#   xq_ref     : (n_q, F)         flattened query images
#   w_ref      : (F, D)           linear backbone weights (bias cancels)
#   o_ref      : (n_q, n_way)     scores = -cdist(z_query, z_proto)
# ----------------------------------------------------------------------------
def _make_fused_kernel(n_way, n_s, n_q):
    def kernel(labels_ref, xs_ref, xq_ref, w_ref, o_ref):
        # One-hot averaging matrix built in-kernel (VPU compare vs. iota).
        cls = jax.lax.broadcasted_iota(jnp.int32, (n_way, n_s), 0)
        onehot_t = (labels_ref[...] == cls).astype(jnp.float32)     # (n_way, n_s)
        counts = jnp.sum(onehot_t, axis=-1, keepdims=True)          # (n_way, 1)

        # Class-mean of support IMAGES (mean commutes with the linear backbone).
        x_proto = (
            jnp.dot(onehot_t, xs_ref[...], preferred_element_type=jnp.float32)
            / counts
        )                                                            # (n_way, F)

        # Backbone: two dots sharing the single VMEM-resident weight tile.
        # Bias omitted — it cancels exactly in the Euclidean distance.
        proto = jnp.dot(x_proto, w_ref[...],
                        preferred_element_type=jnp.float32)          # (n_way, D)
        zq = jnp.dot(xq_ref[...], w_ref[...],
                     preferred_element_type=jnp.float32)             # (n_q, D)

        # Euclidean cdist via Gram identity (MXU-friendly, no 3-D intermediate).
        q2 = jnp.sum(zq * zq, axis=-1, keepdims=True)                # (n_q, 1)
        p2 = jnp.sum(proto * proto, axis=-1, keepdims=True)          # (n_way, 1)
        gram = jnp.einsum("qd,pd->qp", zq, proto,
                          preferred_element_type=jnp.float32)        # (n_q, n_way)
        d2 = jnp.maximum(q2 + jnp.reshape(p2, (1, n_way)) - 2.0 * gram, 0.0)
        o_ref[...] = -jnp.sqrt(d2)

    return kernel


# ----------------------------------------------------------------------------
# Wrapper reproducing PrototypicalNetworks.forward (single fused dispatch).
# n_way is static (torch.unique(support_labels) semantics, labels assumed to
# be exactly {0..n_way-1}).
# ----------------------------------------------------------------------------
@partial(jax.jit, static_argnames=("n_way",))
def prototypical_forward(support_images, support_labels, query_images, w, *, n_way):
    n_s = support_images.shape[0]
    n_q = query_images.shape[0]
    # Flatten NCHW row-major (same as nn.Flatten on NCHW).
    xs = support_images.reshape(n_s, -1)
    xq = query_images.reshape(n_q, -1)
    labels2d = support_labels.reshape(1, n_s).astype(jnp.int32)

    f = xs.shape[1]
    d = w.shape[1]
    cost = pl.CostEstimate(
        flops=2 * n_way * n_s * f        # in-kernel class mean
        + 2 * (n_way + n_q) * f * d      # backbone matmuls
        + 2 * n_q * n_way * d,           # Gram matmul
        transcendentals=0,
        bytes_accessed=4 * (n_s + n_s * f + n_q * f + f * d + n_q * n_way),
    )
    # Output is (n_q, n_way) = (8, 4): not lane-dense, but negligible at this
    # size (see TODO above for the scaled-up / batched-episode layout).
    return pl.pallas_call(
        _make_fused_kernel(n_way, n_s, n_q),
        out_shape=jax.ShapeDtypeStruct((n_q, n_way), jnp.float32),
        in_specs=[
            pl.BlockSpec((1, n_s), lambda: (0, 0)),
            pl.BlockSpec((n_s, f), lambda: (0, 0)),
            pl.BlockSpec((n_q, f), lambda: (0, 0)),
            pl.BlockSpec((f, d), lambda: (0, 0)),
        ],
        out_specs=pl.BlockSpec((n_q, n_way), lambda: (0, 0)),
        cost_estimate=cost,
    )(labels2d, xs, xq, w)


# Pure-JAX reference (mirrors the PyTorch module semantics, WITH bias) used to
# verify both correctness and the bias-cancellation claim.
def _reference(support_images, support_labels, query_images, w, b):
    n_s = support_images.shape[0]
    n_q = query_images.shape[0]
    zs = support_images.reshape(n_s, -1) @ w + b
    zq = query_images.reshape(n_q, -1) @ w + b
    labels_np = np.asarray(support_labels)
    n_way = int(len(np.unique(labels_np)))
    protos = jnp.stack(
        [zs[labels_np == c].mean(axis=0) for c in range(n_way)], axis=0
    )
    d = jnp.sqrt(jnp.sum((zq[:, None, :] - protos[None, :, :]) ** 2, axis=-1))
    return -d


if __name__ == "__main__":
    key = jax.random.PRNGKey(0)
    k1, k2, k3, k4 = jax.random.split(key, 4)

    # Small few-shot episode: 4-way, 2-shot support, 8 queries.
    n_way, k_shot, n_query = 4, 2, 8
    C, H, W = 4, 8, 8
    D = 128  # embedding dim
    F = C * H * W

    support_images = jax.random.normal(k1, (n_way * k_shot, C, H, W), jnp.float32)
    query_images = jax.random.normal(k2, (n_query, C, H, W), jnp.float32)
    support_labels = jnp.array([0, 1, 2, 3, 0, 1, 2, 3], dtype=jnp.int32)

    # Deterministic backbone parameters (Flatten + Linear(F -> D)).
    w = jax.random.normal(k3, (F, D), jnp.float32) * 0.05
    b = jax.random.normal(k4, (1, D), jnp.float32) * 0.01  # reference-only; cancels

    scores = prototypical_forward(
        support_images, support_labels, query_images, w, n_way=n_way
    )
    scores = jax.block_until_ready(scores)

    ref = _reference(support_images, support_labels, query_images, w, b)
    np.testing.assert_allclose(np.asarray(scores), np.asarray(ref), rtol=1e-4, atol=1e-4)

    print("KERNEL_OK")
</pallas_src>

<mosaic_0001>
module attributes {stable_mosaic.version = 11 : i64} {
  func.func @kernel(%arg0: memref<1x8xi32, #tpu.memory_space<vmem>>, %arg1: memref<8x256xf32, #tpu.memory_space<vmem>>, %arg2: memref<8x256xf32, #tpu.memory_space<vmem>>, %arg3: memref<256x128xf32, #tpu.memory_space<vmem>>, %arg4: memref<8x4xf32, #tpu.memory_space<vmem>>) attributes {dimension_semantics = [], scalar_prefetch = 0 : i64, scratch_operands = 0 : i64, tpu.core_type = #tpu.core_type<tc>} {
    %0 = tpu.iota {dimensions = array<i32: 0>} : vector<4x8xi32>
    %c0 = arith.constant 0 : index
    %c0_0 = arith.constant 0 : index
    %1 = vector.load %arg0[%c0, %c0_0] : memref<1x8xi32, #tpu.memory_space<vmem>>, vector<1x8xi32>
    %2 = vector.broadcast %1 : vector<1x8xi32> to vector<4x8xi32>
    %3 = arith.cmpi eq, %2, %0 : vector<4x8xi32>
    %4 = arith.extui %3 : vector<4x8xi1> to vector<4x8xi32>
    %5 = arith.sitofp %4 : vector<4x8xi32> to vector<4x8xf32>
    %cst = arith.constant dense<0.000000e+00> : vector<4xf32>
    %6 = vector.multi_reduction <add>, %5, %cst [1] : vector<4x8xf32> to vector<4xf32>
    %7 = vector.shape_cast %6 : vector<4xf32> to vector<4x1xf32>
    %c0_1 = arith.constant 0 : index
    %c0_2 = arith.constant 0 : index
    %8 = vector.load %arg1[%c0_1, %c0_2] : memref<8x256xf32, #tpu.memory_space<vmem>>, vector<8x256xf32>
    %cst_3 = arith.constant dense<0.000000e+00> : vector<4x256xf32>
    %9 = tpu.matmul %5, %8, %cst_3 {dimension_numbers = #tpu.dot_dimension_numbers<[1], [0], [0], [1], [0, 0, 1, 1], [], []>} : vector<4x8xf32>, vector<8x256xf32>, vector<4x256xf32> -> vector<4x256xf32>
    %10 = vector.broadcast %7 : vector<4x1xf32> to vector<4x256xf32>
    %11 = arith.divf %9, %10 : vector<4x256xf32>
    %c0_4 = arith.constant 0 : index
    %c0_5 = arith.constant 0 : index
    %12 = vector.load %arg3[%c0_4, %c0_5] : memref<256x128xf32, #tpu.memory_space<vmem>>, vector<256x128xf32>
    %cst_6 = arith.constant dense<0.000000e+00> : vector<4x128xf32>
    %13 = tpu.matmul %11, %12, %cst_6 {dimension_numbers = #tpu.dot_dimension_numbers<[1], [0], [0], [1], [0, 0, 1, 1], [], []>} : vector<4x256xf32>, vector<256x128xf32>, vector<4x128xf32> -> vector<4x128xf32>
    %c0_7 = arith.constant 0 : index
    %c0_8 = arith.constant 0 : index
    %14 = vector.load %arg2[%c0_7, %c0_8] : memref<8x256xf32, #tpu.memory_space<vmem>>, vector<8x256xf32>
    %c0_9 = arith.constant 0 : index
    %c0_10 = arith.constant 0 : index
    %15 = vector.load %arg3[%c0_9, %c0_10] : memref<256x128xf32, #tpu.memory_space<vmem>>, vector<256x128xf32>
    %cst_11 = arith.constant dense<0.000000e+00> : vector<8x128xf32>
    %16 = tpu.matmul %14, %15, %cst_11 {dimension_numbers = #tpu.dot_dimension_numbers<[1], [0], [0], [1], [0, 0, 1, 1], [], []>} : vector<8x256xf32>, vector<256x128xf32>, vector<8x128xf32> -> vector<8x128xf32>
    %17 = arith.mulf %16, %16 : vector<8x128xf32>
    %cst_12 = arith.constant dense<0.000000e+00> : vector<8xf32>
    %18 = vector.multi_reduction <add>, %17, %cst_12 [1] : vector<8x128xf32> to vector<8xf32>
    %19 = vector.shape_cast %18 : vector<8xf32> to vector<8x1xf32>
    %20 = arith.mulf %13, %13 : vector<4x128xf32>
    %cst_13 = arith.constant dense<0.000000e+00> : vector<4xf32>
    %21 = vector.multi_reduction <add>, %20, %cst_13 [1] : vector<4x128xf32> to vector<4xf32>
    %22 = vector.shape_cast %21 : vector<4xf32> to vector<4x1xf32>
    "tpu.trace_start"() <{level = 10 : i32, message = "qd,pd->qp"}> : () -> ()
    %cst_14 = arith.constant dense<0.000000e+00> : vector<8x4xf32>
    %23 = tpu.matmul %16, %13, %cst_14 {dimension_numbers = #tpu.dot_dimension_numbers<[1], [1], [0], [0], [0, 0, 1, 0], [], []>} : vector<8x128xf32>, vector<4x128xf32>, vector<8x4xf32> -> vector<8x4xf32>
    "tpu.trace_stop"() : () -> ()
    %24 = vector.shape_cast %22 : vector<4x1xf32> to vector<1x4xf32>
    %25 = vector.broadcast %19 : vector<8x1xf32> to vector<8x4xf32>
    %26 = vector.broadcast %24 : vector<1x4xf32> to vector<8x4xf32>
    %27 = arith.addf %25, %26 : vector<8x4xf32>
    %cst_15 = arith.constant 2.000000e+00 : f32
    %28 = vector.broadcast %cst_15 : f32 to vector<8x4xf32>
    %29 = arith.mulf %28, %23 : vector<8x4xf32>
    %30 = arith.subf %27, %29 : vector<8x4xf32>
    %cst_16 = arith.constant 0.000000e+00 : f32
    %31 = vector.broadcast %cst_16 : f32 to vector<8x4xf32>
    %32 = arith.maximumf %30, %31 : vector<8x4xf32>
    %33 = math.sqrt %32 : vector<8x4xf32>
    %cst_17 = arith.constant 0.000000e+00 : f32
    %34 = vector.broadcast %cst_17 : f32 to vector<8x4xf32>
    %35 = arith.subf %34, %33 : vector<8x4xf32>
    %c0_18 = arith.constant 0 : index
    %c0_19 = arith.constant 0 : index
    %36 = vector.load %arg4[%c0_18, %c0_19] : memref<8x4xf32, #tpu.memory_space<vmem>>, vector<8x4xf32>
    tpu.vector_store %arg4[%c0_18, %c0_19], %35 {strides = array<i32>} : memref<8x4xf32, #tpu.memory_space<vmem>>, vector<8x4xf32>,
    return
  }
}

</mosaic_0001>

<llo_original>
// kernel: prototypical_forward.1
$region0: #{prototypical_forward.1}
  #allocation0 [shape = 'u32[]', space=smem, size = 0x4, offset = 0x4, fixed_abs, tag = 'smem constant byte address 0x4 - core index']
  #allocation1 [shape = 'u32[144,128]{1,0:T(1,128)}', space=vmem, size = 0x12000, scoped, tag = 'internal scratch']
  %s0 = inlined_call_operand.vmem [shape: s32[1,8], index: 0, kind: input, shape index: {}]
  %s1 = inlined_call_operand.vmem [shape: f32[8,256], index: 1, kind: input, shape index: {}]
  %s2 = inlined_call_operand.vmem [shape: f32[8,256], index: 2, kind: input, shape index: {}]
  %s3 = inlined_call_operand.vmem [shape: f32[256,128], index: 3, kind: input, shape index: {}]
  %s4 = inlined_call_operand.vmem [shape: f32[8,4], index: 4, kind: output, shape index: {}]
  %s5 = sld [smem:[#allocation0]]
  $region26: #{prototypical_forward.1} parent=0
    _
  %s7 = ssub.s32 1, %s5
  %s8 = scalar_select 0, %s7, %s5
  // Predicated region
  $region2: #{prototypical_forward.1} parent=0 // pred_check
    _
  $region3: #{prototypical_forward.1} parent=0 // pred_check_branch
    %10 = sbr.rel (0) target = $region5
  $region4: #{prototypical_forward.1} parent=0 // pred_region
    _
  $region5: #{prototypical_forward.1} parent=0 // pred_fallthru
    _
  // Predicated region
  $region6: #{prototypical_forward.1} parent=0 // pred_check
    _
  $region7: #{prototypical_forward.1} parent=0 // pred_check_branch
    %12 = sbr.rel (0) target = $region9
  $region8: #{prototypical_forward.1} parent=0 // pred_region
    _
  $region9: #{prototypical_forward.1} parent=0 // pred_fallthru
    _
  // Predicated region
  $region10: #{prototypical_forward.1} parent=0 // pred_check
    _
  $region11: #{prototypical_forward.1} parent=0 // pred_check_branch
    %14 = sbr.rel (0) target = $region13
  $region12: #{prototypical_forward.1} parent=0 // pred_region
    _
  $region13: #{prototypical_forward.1} parent=0 // pred_fallthru
    _
  // Predicated region
  $region14: #{prototypical_forward.1} parent=0 // pred_check
    _
  $region15: #{prototypical_forward.1} parent=0 // pred_check_branch
    %16 = sbr.rel (0) target = $region17
  $region16: #{prototypical_forward.1} parent=0 // pred_region
    _
  $region17: #{prototypical_forward.1} parent=0 // pred_fallthru
    _
  %v17 = vlaneseq
  %v18 = vshrl.u32 %v17, 7
  %v19 = vld [vmem:[%s0] sm:$0x1]
  %v20 = vlaneseq
  %v21 = vshrl.u32 %v20, 7
  %v22 = vsub.s32 0, %v21
  %v23 = vrot.slane %v19, %v22
  %vm24 = vcmp.eq.s32.totalorder %v23, %v18
  %v25 = vsel %vm24, 1, 0
  %v26 = vcvt.s32.f32 %v25
  %vm27 = vcmask 60416
  %v28 = vsel %vm27, %v26, 0.0
  %29 = vadd.xlane.f32.xlu0 %v28
  %v30 = vpop.xlane.xlu0 %29
  %v31 = vld [vmem:[%s1] sm:$0xff]
  %v32 = vld [vmem:[%s1 + $0x8] sm:$0xff]
  %vm33 = vcmask 64512
  %v35 = vsel %vm33, %v26, 0
  %37 = vmatprep.subr.mxu0 0.0
  %38 = vmatpush1.msra.mxu0 0.0
  %39 = vmatprep.subr.mxu0 0.0
  %40 = vmatpush1.msra.mxu0 0.0
  %41 = vmatprep.subr.mxu0 0.0
  %42 = vmatpush1.msra.mxu0 0.0
  %43 = vmatprep.subr.mxu0 0.0
  %44 = vmatpush1.msra.mxu0 0.0
  %45 = vmatprep.subr.mxu0 0.0
  %46 = vmatpush1.msra.mxu0 0.0
  %47 = vmatprep.subr.mxu0 0.0
  %48 = vmatpush1.msra.mxu0 0.0
  %49 = vmatprep.subr.mxu0 0.0
  %50 = vmatpush1.msra.mxu0 0.0
  %51 = vmatprep.subr.mxu0 0.0
  %52 = vmatpush1.msra.mxu0 0.0
  %53 = vmatprep.subr.mxu0 0.0
  %54 = vmatpush1.msra.mxu0 0.0
  %55 = vmatprep.subr.mxu0 0.0
  %56 = vmatpush1.msra.mxu0 0.0
  %57 = vmatprep.subr.mxu0 0.0
  %58 = vmatpush1.msra.mxu0 0.0
  %59 = vmatprep.subr.mxu0 0.0
  %60 = vmatpush1.msra.mxu0 0.0
  %61 = vmatprep.subr.mxu0 0.0
  %62 = vmatpush1.msra.mxu0 0.0
  %63 = vmatprep.subr.mxu0 0.0
  %64 = vmatpush1.msra.mxu0 0.0
  %65 = vmatprep.subr.mxu0 0.0
  %66 = vmatpush1.msra.mxu0 0.0
  %67 = vmatprep.subr.mxu0 %v32
  %68 = vmatpush1.msra.mxu0 %v31
  %69 = vmatprep.subr.mxu0 0.0
  %70 = vmatpush2.msra.mxu0 0.0
  %71 = vmatprep.subr.mxu0 0.0
  %72 = vmatpush2.msra.mxu0 0.0
  %73 = vmatprep.subr.mxu0 0.0
  %74 = vmatpush2.msra.mxu0 0.0
  %75 = vmatprep.subr.mxu0 0.0
  %76 = vmatpush2.msra.mxu0 0.0
  %77 = vmatprep.subr.mxu0 0.0
  %78 = vmatpush2.msra.mxu0 0.0
  %79 = vmatprep.subr.mxu0 0.0
  %80 = vmatpush2.msra.mxu0 0.0
  %81 = vmatprep.subr.mxu0 0.0
  %82 = vmatpush2.msra.mxu0 0.0
  %83 = vmatprep.subr.mxu0 0.0
  %84 = vmatpush2.msra.mxu0 0.0
  %85 = vmatprep.subr.mxu0 0.0
  %86 = vmatpush2.msra.mxu0 0.0
  %87 = vmatprep.subr.mxu0 0.0
  %88 = vmatpush2.msra.mxu0 0.0
  %89 = vmatprep.subr.mxu0 0.0
  %90 = vmatpush2.msra.mxu0 0.0
  %91 = vmatprep.subr.mxu0 0.0
  %92 = vmatpush2.msra.mxu0 0.0
  %93 = vmatprep.subr.mxu0 0.0
  %94 = vmatpush2.msra.mxu0 0.0
  %95 = vmatprep.subr.mxu0 0.0
  %96 = vmatpush2.msra.mxu0 0.0
  %97 = vmatprep.subr.mxu0 0.0
  %98 = vmatpush2.msra.mxu0 0.0
  %99 = vmatprep.subr.mxu0 0.0
  %100 = vmatpush2.msra.mxu0 0.0
  %101 = vmatprep.mubr.f32.mxu0 0.0
  %102 = vmatmul.mubr.f32.gmra.mxu0 %v35
  %v103 = vpop.f32.mrf.mxu0
  %v104 = vadd.f32 0.0, %v103
  %v105 = vpop.f32.mrf.mxu0
  %v106 = vadd.f32 0.0, %v105
  %107 = vdwg.mxu0
  %v108 = vrcp.pop %v30
  %v109 = vmul.f32 %v104, %v108
  %v110 = vmul.f32 %v106, %v108
  %v111 = vld [vmem:[%s3] sm:$0xff]
  %v112 = vld [vmem:[%s3 + $0x8] sm:$0xff]
  %v113 = vld [vmem:[%s3 + $0x10] sm:$0xff]
  %v114 = vld [vmem:[%s3 + $0x18] sm:$0xff]
  %v115 = vld [vmem:[%s3 + $0x20] sm:$0xff]
  %v116 = vld [vmem:[%s3 + $0x28] sm:$0xff]
  %v117 = vld [vmem:[%s3 + $0x30] sm:$0xff]
  %v118 = vld [vmem:[%s3 + $0x38] sm:$0xff]
  %v119 = vld [vmem:[%s3 + $0x40] sm:$0xff]
  %v120 = vld [vmem:[%s3 + $0x48] sm:$0xff]
  %v121 = vld [vmem:[%s3 + $0x50] sm:$0xff]
  %v122 = vld [vmem:[%s3 + $0x58] sm:$0xff]
  %v123 = vld [vmem:[%s3 + $0x60] sm:$0xff]
  %v124 = vld [vmem:[%s3 + $0x68] sm:$0xff]
  %v125 = vld [vmem:[%s3 + $0x70] sm:$0xff]
  %v126 = vld [vmem:[%s3 + $0x78] sm:$0xff]
  %v127 = vld [vmem:[%s3 + $0x80] sm:$0xff]
  %v128 = vld [vmem:[%s3 + $0x88] sm:$0xff]
  %v129 = vld [vmem:[%s3 + $0x90] sm:$0xff]
  %v130 = vld [vmem:[%s3 + $0x98] sm:$0xff]
  %v131 = vld [vmem:[%s3 + $0xa0] sm:$0xff]
  %v132 = vld [vmem:[%s3 + $0xa8] sm:$0xff]
  %v133 = vld [vmem:[%s3 + $0xb0] sm:$0xff]
  %v134 = vld [vmem:[%s3 + $0xb8] sm:$0xff]
  %v135 = vld [vmem:[%s3 + $0xc0] sm:$0xff]
  %v136 = vld [vmem:[%s3 + $0xc8] sm:$0xff]
  %v137 = vld [vmem:[%s3 + $0xd0] sm:$0xff]
  %v138 = vld [vmem:[%s3 + $0xd8] sm:$0xff]
  %v139 = vld [vmem:[%s3 + $0xe0] sm:$0xff]
  %v140 = vld [vmem:[%s3 + $0xe8] sm:$0xff]
  %v141 = vld [vmem:[%s3 + $0xf0] sm:$0xff]
  %v142 = vld [vmem:[%s3 + $0xf8] sm:$0xff]
  %143 = vmatprep.subr.mxu0 0.0
  %144 = vmatpush1.msra.mxu0 %v126
  %145 = vmatprep.subr.mxu0 0.0
  %146 = vmatpush1.msra.mxu0 %v125
  %147 = vmatprep.subr.mxu0 0.0
  %148 = vmatpush1.msra.mxu0 %v124
  %149 = vmatprep.subr.mxu0 0.0
  %150 = vmatpush1.msra.mxu0 %v123
  %151 = vmatprep.subr.mxu0 0.0
  %152 = vmatpush1.msra.mxu0 %v122
  %153 = vmatprep.subr.mxu0 0.0
  %154 = vmatpush1.msra.mxu0 %v121
  %155 = vmatprep.subr.mxu0 0.0
  %156 = vmatpush1.msra.mxu0 %v120
  %157 = vmatprep.subr.mxu0 0.0
  %158 = vmatpush1.msra.mxu0 %v119
  %159 = vmatprep.subr.mxu0 0.0
  %160 = vmatpush1.msra.mxu0 %v118
  %161 = vmatprep.subr.mxu0 0.0
  %162 = vmatpush1.msra.mxu0 %v117
  %163 = vmatprep.subr.mxu0 0.0
  %164 = vmatpush1.msra.mxu0 %v116
  %165 = vmatprep.subr.mxu0 0.0
  %166 = vmatpush1.msra.mxu0 %v115
  %167 = vmatprep.subr.mxu0 0.0
  %168 = vmatpush1.msra.mxu0 %v114
  %169 = vmatprep.subr.mxu0 0.0
  %170 = vmatpush1.msra.mxu0 %v113
  %171 = vmatprep.subr.mxu0 0.0
  %172 = vmatpush1.msra.mxu0 %v112
  %173 = vmatprep.subr.mxu0 0.0
  %174 = vmatpush1.msra.mxu0 %v111
  %175 = vmatprep.subr.mxu0 0.0
  %176 = vmatpush2.msra.mxu0 %v142
  %177 = vmatprep.subr.mxu0 0.0
  %178 = vmatpush2.msra.mxu0 %v141
  %179 = vmatprep.subr.mxu0 0.0
  %180 = vmatpush2.msra.mxu0 %v140
  %181 = vmatprep.subr.mxu0 0.0
  %182 = vmatpush2.msra.mxu0 %v139
  %183 = vmatprep.subr.mxu0 0.0
  %184 = vmatpush2.msra.mxu0 %v138
  %185 = vmatprep.subr.mxu0 0.0
  %186 = vmatpush2.msra.mxu0 %v137
  %187 = vmatprep.subr.mxu0 0.0
  %188 = vmatpush2.msra.mxu0 %v136
  %189 = vmatprep.subr.mxu0 0.0
  %190 = vmatpush2.msra.mxu0 %v135
  %191 = vmatprep.subr.mxu0 0.0
  %192 = vmatpush2.msra.mxu0 %v134
  %193 = vmatprep.subr.mxu0 0.0
  %194 = vmatpush2.msra.mxu0 %v133
  %195 = vmatprep.subr.mxu0 0.0
  %196 = vmatpush2.msra.mxu0 %v132
  %197 = vmatprep.subr.mxu0 0.0
  %198 = vmatpush2.msra.mxu0 %v131
  %199 = vmatprep.subr.mxu0 0.0
  %200 = vmatpush2.msra.mxu0 %v130
  %201 = vmatprep.subr.mxu0 0.0
  %202 = vmatpush2.msra.mxu0 %v129
  %203 = vmatprep.subr.mxu0 0.0
  %204 = vmatpush2.msra.mxu0 %v128
  %205 = vmatprep.subr.mxu0 0.0
  %206 = vmatpush2.msra.mxu0 %v127
  %207 = vmatprep.mubr.f32.mxu0 %v110
  %208 = vmatmul.mubr.f32.gmra.mxu0 %v109
  %v209 = vpop.f32.mrf.mxu0
  %v210 = vadd.f32 0.0, %v209
  %v211 = vpop.f32.mrf.mxu0
  %212 = vdwg.mxu0
  %v213 = vld [vmem:[%s2] sm:$0xff]
  %v214 = vld [vmem:[%s2 + $0x8] sm:$0xff]
  %215 = vmatprep.subr.mxu0 0.0
  %216 = vmatpush1.msra.mxu0 %v126
  %217 = vmatprep.subr.mxu0 0.0
  %218 = vmatpush1.msra.mxu0 %v125
  %219 = vmatprep.subr.mxu0 0.0
  %220 = vmatpush1.msra.mxu0 %v124
  %221 = vmatprep.subr.mxu0 0.0
  %222 = vmatpush1.msra.mxu0 %v123
  %223 = vmatprep.subr.mxu0 0.0
  %224 = vmatpush1.msra.mxu0 %v122
  %225 = vmatprep.subr.mxu0 0.0
  %226 = vmatpush1.msra.mxu0 %v121
  %227 = vmatprep.subr.mxu0 0.0
  %228 = vmatpush1.msra.mxu0 %v120
  %229 = vmatprep.subr.mxu0 0.0
  %230 = vmatpush1.msra.mxu0 %v119
  %231 = vmatprep.subr.mxu0 0.0
  %232 = vmatpush1.msra.mxu0 %v118
  %233 = vmatprep.subr.mxu0 0.0
  %234 = vmatpush1.msra.mxu0 %v117
  %235 = vmatprep.subr.mxu0 0.0
  %236 = vmatpush1.msra.mxu0 %v116
  %237 = vmatprep.subr.mxu0 0.0
  %238 = vmatpush1.msra.mxu0 %v115
  %239 = vmatprep.subr.mxu0 0.0
  %240 = vmatpush1.msra.mxu0 %v114
  %241 = vmatprep.subr.mxu0 0.0
  %242 = vmatpush1.msra.mxu0 %v113
  %243 = vmatprep.subr.mxu0 0.0
  %244 = vmatpush1.msra.mxu0 %v112
  %245 = vmatprep.subr.mxu0 0.0
  %246 = vmatpush1.msra.mxu0 %v111
  %247 = vmatprep.subr.mxu0 0.0
  %248 = vmatpush2.msra.mxu0 %v142
  %249 = vmatprep.subr.mxu0 0.0
  %250 = vmatpush2.msra.mxu0 %v141
  %251 = vmatprep.subr.mxu0 0.0
  %252 = vmatpush2.msra.mxu0 %v140
  %253 = vmatprep.subr.mxu0 0.0
  %254 = vmatpush2.msra.mxu0 %v139
  %255 = vmatprep.subr.mxu0 0.0
  %256 = vmatpush2.msra.mxu0 %v138
  %257 = vmatprep.subr.mxu0 0.0
  %258 = vmatpush2.msra.mxu0 %v137
  %259 = vmatprep.subr.mxu0 0.0
  %260 = vmatpush2.msra.mxu0 %v136
  %261 = vmatprep.subr.mxu0 0.0
  %262 = vmatpush2.msra.mxu0 %v135
  %263 = vmatprep.subr.mxu0 0.0
  %264 = vmatpush2.msra.mxu0 %v134
  %265 = vmatprep.subr.mxu0 0.0
  %266 = vmatpush2.msra.mxu0 %v133
  %267 = vmatprep.subr.mxu0 0.0
  %268 = vmatpush2.msra.mxu0 %v132
  %269 = vmatprep.subr.mxu0 0.0
  %270 = vmatpush2.msra.mxu0 %v131
  %271 = vmatprep.subr.mxu0 0.0
  %272 = vmatpush2.msra.mxu0 %v130
  %273 = vmatprep.subr.mxu0 0.0
  %274 = vmatpush2.msra.mxu0 %v129
  %275 = vmatprep.subr.mxu0 0.0
  %276 = vmatpush2.msra.mxu0 %v128
  %277 = vmatprep.subr.mxu0 0.0
  %278 = vmatpush2.msra.mxu0 %v127
  %279 = vmatprep.mubr.f32.mxu0 %v214
  %280 = vmatmul.mubr.f32.gmra.mxu0 %v213
  %v281 = vpop.f32.mrf.mxu0
  %v282 = vadd.f32 0.0, %v281
  %v283 = vpop.f32.mrf.mxu0
  %284 = vdwg.mxu0
  %v285 = vmul.f32 %v282, %v282
  %286 = vadd.xlane.f32.xlu0 %v285
  %v287 = vpop.xlane.xlu0 %286
  %v288 = vmul.f32 %v210, %v210
  %vm289 = vcmask 1043456
  %v290 = vsel %vm289, %v288, 0.0
  %291 = vadd.xlane.f32.xlu0 %v290
  %v292 = vpop.xlane.xlu0 %291
  %293 = vmatprep.subr.mxu0 0.0
  %294 = vmatpush1.xpose.msra.mxu0 0.0
  %295 = vmatprep.subr.mxu0 0.0
  %296 = vmatpush1.xpose.msra.mxu0 0.0
  %297 = vmatprep.subr.mxu0 0.0
  %298 = vmatpush1.xpose.msra.mxu0 0.0
  %299 = vmatprep.subr.mxu0 0.0
  %300 = vmatpush1.xpose.msra.mxu0 0.0
  %301 = vmatprep.subr.mxu0 0.0
  %302 = vmatpush1.xpose.msra.mxu0 0.0
  %303 = vmatprep.subr.mxu0 0.0
  %304 = vmatpush1.xpose.msra.mxu0 0.0
  %305 = vmatprep.subr.mxu0 0.0
  %306 = vmatpush1.xpose.msra.mxu0 0.0
  %307 = vmatprep.subr.mxu0 0.0
  %308 = vmatpush1.xpose.msra.mxu0 0.0
  %309 = vmatprep.subr.mxu0 0.0
  %310 = vmatpush1.xpose.msra.mxu0 0.0
  %311 = vmatprep.subr.mxu0 0.0
  %312 = vmatpush1.xpose.msra.mxu0 0.0
  %313 = vmatprep.subr.mxu0 0.0
  %314 = vmatpush1.xpose.msra.mxu0 0.0
  %315 = vmatprep.subr.mxu0 0.0
  %316 = vmatpush1.xpose.msra.mxu0 0.0
  %317 = vmatprep.subr.mxu0 0.0
  %318 = vmatpush1.xpose.msra.mxu0 0.0
  %319 = vmatprep.subr.mxu0 0.0
  %320 = vmatpush1.xpose.msra.mxu0 0.0
  %321 = vmatprep.subr.mxu0 0.0
  %322 = vmatpush1.xpose.msra.mxu0 0.0
  %323 = vmatprep.subr.mxu0 0.0
  %324 = vmatpush1.xpose.msra.mxu0 %v210
  %325 = vmatprep.subr.mxu0 0.0
  %326 = vmatpush2.xpose.msra.mxu0 0.0
  %327 = vmatprep.subr.mxu0 0.0
  %328 = vmatpush2.xpose.msra.mxu0 0.0
  %329 = vmatprep.subr.mxu0 0.0
  %330 = vmatpush2.xpose.msra.mxu0 0.0
  %331 = vmatprep.subr.mxu0 0.0
  %332 = vmatpush2.xpose.msra.mxu0 0.0
  %333 = vmatprep.subr.mxu0 0.0
  %334 = vmatpush2.xpose.msra.mxu0 0.0
  %335 = vmatprep.subr.mxu0 0.0
  %336 = vmatpush2.xpose.msra.mxu0 0.0
  %337 = vmatprep.subr.mxu0 0.0
  %338 = vmatpush2.xpose.msra.mxu0 0.0
  %339 = vmatprep.subr.mxu0 0.0
  %340 = vmatpush2.xpose.msra.mxu0 0.0
  %341 = vmatprep.subr.mxu0 0.0
  %342 = vmatpush2.xpose.msra.mxu0 0.0
  %343 = vmatprep.subr.mxu0 0.0
  %344 = vmatpush2.xpose.msra.mxu0 0.0
  %345 = vmatprep.subr.mxu0 0.0
  %346 = vmatpush2.xpose.msra.mxu0 0.0
  %347 = vmatprep.subr.mxu0 0.0
  %348 = vmatpush2.xpose.msra.mxu0 0.0
  %349 = vmatprep.subr.mxu0 0.0
  %350 = vmatpush2.xpose.msra.mxu0 0.0
  %351 = vmatprep.subr.mxu0 0.0
  %352 = vmatpush2.xpose.msra.mxu0 0.0
  %353 = vmatprep.subr.mxu0 0.0
  %354 = vmatpush2.xpose.msra.mxu0 0.0
  %355 = vmatprep.subr.mxu0 0.0
  %356 = vmatpush2.xpose.msra.mxu0 0.0
  %357 = vmatprep.mubr.f32.mxu0 0.0
  %358 = vmatmul.mubr.f32.gmra.mxu0 %v282
  %v359 = vpop.f32.mrf.mxu0
  %v360 = vadd.f32 0.0, %v359
  %v361 = vpop.f32.mrf.mxu0
  %362 = vdwg.mxu0
  %v364 = vlaneseq
  %v365 = vand.u32 %v364, 127
  %v366 = vlaneseq
  %v367 = vshrl.u32 %v366, 7
  %v368 = vsub.s32 %v365, %v367
  %v369 = vrot.slane %v292, %v368
  %vm370 = vcmask 1042434
  %v371 = vsel %vm370, %v369, %v369
  %vm372 = vcmask 1043459
  %v373 = vsel %vm372, %v369, %v371
  %vm374 = vcmask 1044484
  %v375 = vsel %vm374, %v369, %v373
  %vm376 = vcmask 1045509
  %v377 = vsel %vm376, %v369, %v375
  %vm378 = vcmask 1046534
  %v379 = vsel %vm378, %v369, %v377
  %vm380 = vcmask 1047559
  %v381 = vsel %vm380, %v369, %v379
  %v383 = vadd.f32 %v287, %v381
  %v384 = vmul.f32 %v360, 2.0
  %v385 = vsub.f32 %v383, %v384
  %v386 = vmax.f32 %v385, 0.0
  %v387 = vrsqrt.pop %v386
  %v388 = vmul.f32 %v386, %v387
  %vm389 = vcmp.eq.f32.partialorder %v386, inf
  %v390 = vsel %vm389, %v386, %v388
  %vm391 = vcmp.eq.f32.partialorder %v386, 0.0
  %v392 = vand.u32 %v386, 2147483648
  %v393 = vsel %vm391, %v392, %v390
  %v394 = vsub.f32 0.0, %v393
  %vm395 = vcmask 31744
  %396 = vst.msk [vmem:[%s4] sm:$0xff] %vm395, %v394
  // Predicated region
  $region18: #{prototypical_forward.1} parent=0 // pred_check
    _
  $region19: #{prototypical_forward.1} parent=0 // pred_check_branch
    %398 = sbr.rel (0) target = $region21
  $region20: #{prototypical_forward.1} parent=0 // pred_region
    _
  $region21: #{prototypical_forward.1} parent=0 // pred_fallthru
    _
  // Predicated region
  $region22: #{prototypical_forward.1} parent=0 // pred_check
    _
  $region23: #{prototypical_forward.1} parent=0 // pred_check_branch
    %400 = sbr.rel (0) target = $region25
  $region24: #{prototypical_forward.1} parent=0 // pred_region
    _
  $region25: #{prototypical_forward.1} parent=0 // pred_fallthru
    _

</llo_original>
